<compile_context>
chip_gen: v7x
topology: tpu7x:2x2x1
jax: 0.10.0
libtpu: 0.0.40
codegen_flags: <defaults>
</compile_context>

<pallas_src>
import functools
import math

import jax
import jax.numpy as jnp
from jax.experimental import pallas as pl
from jax.experimental.pallas import tpu as pltpu


def _inverted_embed_kernel(x_ref, wt_ref, b_ref, o_ref, *, batch_block):
    # x_ref:  (TB, L, tn)  batch-tile of x in its NATIVE (B, L, V) layout
    # wt_ref: (L, D)       resident W^T (Linear weight transposed once in the wrapper)
    # b_ref:  (1, D)       resident bias (f32)
    # o_ref:  (TB, tn, D)  output tile
    w = wt_ref[...]
    bias = b_ref[...].astype(jnp.float32)
    # Short unrolled loop over the batch tile; each step is one MXU matmul that
    # contracts over L (dim 0 of BOTH operands): out[n, d] = sum_l x[l, n] * Wt[l, d].
    # This fuses the PyTorch permute(0, 2, 1) into the contraction instead of
    # materializing a transposed activation in HBM.
    for b in range(batch_block):
        acc = jax.lax.dot_general(
            x_ref[b], w,
            dimension_numbers=(((0,), (0,)), ((), ())),
            preferred_element_type=jnp.float32)           # (tn, D) f32 accumulate
        o_ref[b] = (acc + bias).astype(o_ref.dtype)


def _select_tiles(B, L, V, D, x_itemsize, out_itemsize,
                  batch_tile, v_tile, vmem_budget_bytes):
    """Pick (TB, tn) respecting the (8,128) BlockSpec rule and a VMEM budget."""
    tb = max(1, min(batch_tile, B))
    if V <= max(v_tile, 128):
        tn = V                                      # full-dim block: always legal
    else:
        tn = max(128, (min(v_tile, V) // 128) * 128)  # lane axis multiple of 128

    def footprint(tb_, tn_):
        x_blk = tb_ * L * tn_ * x_itemsize
        o_blk = tb_ * tn_ * D * out_itemsize
        w_res = L * D * x_itemsize + D * 4
        # Conservative: double-buffer everything (including the resident weight).
        return 2 * (x_blk + o_blk + w_res)

    while footprint(tb, tn) > vmem_budget_bytes:
        if tb > 1:
            tb = max(1, tb // 2)
        elif tn > 128 and tn % 128 == 0:
            tn = max(128, (tn // 2 // 128) * 128)
        else:
            break
    return tb, tn, footprint(tb, tn)


def data_embedding_inverted(x, x_mark, weight, bias, *,
                            batch_tile=8, v_tile=512,
                            compute_dtype=jnp.float32, out_dtype=None,
                            vmem_budget_bytes=20 * 1024 * 1024):
    """Forward pass of DataEmbedding_inverted.

    x:      (B, L, N)   float32
    x_mark: (B, L, M)   float32 or None
    weight: (d_model, L) float32   (PyTorch nn.Linear(c_in=L, d_model) weight)
    bias:   (d_model,)   float32
    returns (B, N [+M], d_model)

    compute_dtype=jnp.bfloat16 casts x / W^T at the HBM boundary (halves streamed
    bytes) while keeping f32 MXU accumulation; keep it opt-in for accuracy.
    """
    d_model, L = weight.shape
    assert x.shape[1] == L, (x.shape, L)

    if x_mark is not None:
        # Cheap input-side concat along the variate axis so ONE pallas_call writes the
        # final (B, N+M, D) buffer directly (no output-side concat, no second launch,
        # no second weight DMA for ~4 mark features).
        x = jnp.concatenate([x, x_mark], axis=-1)

    B, _, V = x.shape
    D = d_model
    if out_dtype is None:
        out_dtype = x.dtype

    # Cast at the HBM boundary so a bf16 compute_dtype actually reduces HBM traffic.
    x_in = x.astype(compute_dtype)
    # Tiny one-time parameter prep (constant-folded under jit with fixed params).
    w_t = jnp.transpose(weight).astype(compute_dtype)    # (L, d_model)
    b2d = bias.astype(jnp.float32).reshape(1, d_model)   # (1, d_model)

    x_itemsize = jnp.dtype(compute_dtype).itemsize
    out_itemsize = jnp.dtype(out_dtype).itemsize
    tb, tn, fp_bytes = _select_tiles(B, L, V, D, x_itemsize, out_itemsize,
                                     batch_tile, v_tile, vmem_budget_bytes)

    grid = (pl.cdiv(B, tb), pl.cdiv(V, tn))
    kernel = functools.partial(_inverted_embed_kernel, batch_block=tb)

    bytes_accessed = (B * L * V * x_itemsize          # x streamed once
                      + L * D * x_itemsize + D * 4    # resident W^T + bias
                      + B * V * D * out_itemsize)     # output written once
    cost = pl.CostEstimate(flops=2 * B * V * L * D, transcendentals=0,
                           bytes_accessed=bytes_accessed)

    # Explicit scoped-VMEM request sized from the actual footprint; stays below v7x's
    # 64 MiB physical VMEM and above v5e's 16 MiB default when larger tiles are used.
    vmem_limit = int(min(max(fp_bytes + (8 << 20), 24 << 20), 48 << 20))

    out = pl.pallas_call(
        kernel,
        out_shape=jax.ShapeDtypeStruct((B, V, D), out_dtype),
        grid_spec=pltpu.PrefetchScalarGridSpec(
            num_scalar_prefetch=0,
            grid=grid,
            in_specs=[
                # x streamed batch-tile x variate-tile in native (B, L, V) layout.
                pl.BlockSpec((tb, L, tn), lambda bi, vi: (bi, 0, vi)),
                # W^T and bias: constant index_map => DMA'd once, VMEM-resident for
                # the whole grid (no re-DMA across grid steps).
                pl.BlockSpec((L, D), lambda bi, vi: (0, 0)),
                pl.BlockSpec((1, D), lambda bi, vi: (0, 0)),
            ],
            out_specs=pl.BlockSpec((tb, tn, D), lambda bi, vi: (bi, vi, 0)),
        ),
        compiler_params=pltpu.CompilerParams(
            # Both grid axes are embarrassingly parallel (lets Mosaic shard across the
            # two TensorCores on v7x; harmless on v5e/v6e).
            dimension_semantics=("parallel", "parallel"),
            vmem_limit_bytes=vmem_limit),
        cost_estimate=cost,
    )(x_in, w_t, b2d)

    # TODO(synk): dropout(p=0.1) omitted — identity at inference; a training-mode kernel
    # would add pltpu.prng_seed + pltpu.stateful_bernoulli in-kernel.
    return out


if __name__ == "__main__":
    key = jax.random.PRNGKey(0)
    kx, kmark, kw, kb, kx2 = jax.random.split(key, 5)

    # ---- Test 1: small shapes consistent with the module (c_in = seq_len L). ----
    B, L, N, M, d_model = 2, 16, 8, 4, 128
    x = jax.random.normal(kx, (B, L, N), dtype=jnp.float32)
    x_mark = jax.random.normal(kmark, (B, L, M), dtype=jnp.float32)

    bound = 1.0 / math.sqrt(L)  # PyTorch-style uniform init for Linear(L, d_model)
    weight = jax.random.uniform(kw, (d_model, L), minval=-bound, maxval=bound,
                                dtype=jnp.float32)
    bias = jax.random.uniform(kb, (d_model,), minval=-bound, maxval=bound,
                              dtype=jnp.float32)

    out = jax.block_until_ready(data_embedding_inverted(x, x_mark, weight, bias))
    xt = jnp.concatenate(
        [jnp.transpose(x, (0, 2, 1)), jnp.transpose(x_mark, (0, 2, 1))], axis=1)
    ref = jnp.einsum("bvl,dl->bvd", xt, weight,
                     precision=jax.lax.Precision.HIGHEST) + bias
    assert out.shape == (B, N + M, d_model)
    assert jnp.allclose(out, ref, atol=1e-4, rtol=1e-4), \
        float(jnp.max(jnp.abs(out - ref)))

    # x_mark = None branch of the module.
    out_none = jax.block_until_ready(data_embedding_inverted(x, None, weight, bias))
    ref_none = jnp.einsum("bvl,dl->bvd", jnp.transpose(x, (0, 2, 1)), weight,
                          precision=jax.lax.Precision.HIGHEST) + bias
    assert out_none.shape == (B, N, d_model)
    assert jnp.allclose(out_none, ref_none, atol=1e-4, rtol=1e-4)

    # ---- Test 2: partial batch tile AND partial variate tile (V % 128 != 0, V > v_tile). ----
    B2, V2 = 3, 200
    x2 = jax.random.normal(kx2, (B2, L, V2), dtype=jnp.float32)
    out2 = jax.block_until_ready(
        data_embedding_inverted(x2, None, weight, bias, batch_tile=2, v_tile=128))
    ref2 = jnp.einsum("bvl,dl->bvd", jnp.transpose(x2, (0, 2, 1)), weight,
                      precision=jax.lax.Precision.HIGHEST) + bias
    assert out2.shape == (B2, V2, d_model)
    assert jnp.allclose(out2, ref2, atol=1e-4, rtol=1e-4), \
        float(jnp.max(jnp.abs(out2 - ref2)))

    # ---- Test 3: opt-in bf16 HBM-boundary path (f32 accumulation on the MXU). ----
    out_bf16 = jax.block_until_ready(
        data_embedding_inverted(x, x_mark, weight, bias,
                                compute_dtype=jnp.bfloat16, out_dtype=jnp.float32))
    assert out_bf16.shape == (B, N + M, d_model)
    assert jnp.allclose(out_bf16, ref, atol=5e-2, rtol=5e-2)

    print("KERNEL_OK")
</pallas_src>

<mosaic_0001>
module attributes {stable_mosaic.version = 11 : i64} {
  func.func @_inverted_embed_kernel(%arg0: i32, %arg1: i32, %arg2: memref<2x16x12xf32, #tpu.memory_space<vmem>>, %arg3: memref<16x128xf32, #tpu.memory_space<vmem>>, %arg4: memref<1x128xf32, #tpu.memory_space<vmem>>, %arg5: memref<2x12x128xf32, #tpu.memory_space<vmem>>) attributes {dimension_semantics = [#tpu.dimension_semantics<parallel>, #tpu.dimension_semantics<parallel>], iteration_bounds = array<i64: 1, 1>, scalar_prefetch = 0 : i64, scratch_operands = 0 : i64, tpu.core_type = #tpu.core_type<tc>, window_params = [{transform_indices = @transform_0, window_bounds = array<i64: 2, 16, 12>}, {pipeline_mode = #tpu.pipeline_mode<synchronous>, transform_indices = @transform_1, window_bounds = array<i64: 16, 128>}, {pipeline_mode = #tpu.pipeline_mode<synchronous>, transform_indices = @transform_2, window_bounds = array<i64: 1, 128>}, {transform_indices = @transform_3, window_bounds = array<i64: 2, 12, 128>}]} {
    %c0 = arith.constant 0 : index
    %c0_0 = arith.constant 0 : index
    %0 = vector.load %arg3[%c0, %c0_0] : memref<16x128xf32, #tpu.memory_space<vmem>>, vector<16x128xf32>
    %c0_1 = arith.constant 0 : index
    %c0_2 = arith.constant 0 : index
    %1 = vector.load %arg4[%c0_1, %c0_2] : memref<1x128xf32, #tpu.memory_space<vmem>>, vector<1x128xf32>
    %c0_3 = arith.constant 0 : index
    %c0_4 = arith.constant 0 : index
    %c0_5 = arith.constant 0 : index
    %2 = vector.load %arg2[%c0_3, %c0_4, %c0_5] : memref<2x16x12xf32, #tpu.memory_space<vmem>>, vector<1x16x12xf32>
    %3 = vector.shape_cast %2 : vector<1x16x12xf32> to vector<16x12xf32>
    %cst = arith.constant dense<0.000000e+00> : vector<12x128xf32>
    %4 = tpu.matmul %3, %0, %cst {dimension_numbers = #tpu.dot_dimension_numbers<[0], [0], [1], [1], [0, 1, 1, 1], [], []>} : vector<16x12xf32>, vector<16x128xf32>, vector<12x128xf32> -> vector<12x128xf32>
    %5 = vector.broadcast %1 : vector<1x128xf32> to vector<12x128xf32>
    %6 = arith.addf %4, %5 : vector<12x128xf32>
    %c0_6 = arith.constant 0 : index
    %c0_7 = arith.constant 0 : index
    %c0_8 = arith.constant 0 : index
    %7 = vector.load %arg5[%c0_6, %c0_7, %c0_8] : memref<2x12x128xf32, #tpu.memory_space<vmem>>, vector<1x12x128xf32>
    %8 = vector.shape_cast %7 : vector<1x12x128xf32> to vector<12x128xf32>
    %9 = vector.shape_cast %6 : vector<12x128xf32> to vector<1x12x128xf32>
    tpu.vector_store %arg5[%c0_6, %c0_7, %c0_8], %9 {strides = array<i32>} : memref<2x12x128xf32, #tpu.memory_space<vmem>>, vector<1x12x128xf32>,
    %c1 = arith.constant 1 : index
    %c0_9 = arith.constant 0 : index
    %c0_10 = arith.constant 0 : index
    %10 = vector.load %arg2[%c1, %c0_9, %c0_10] : memref<2x16x12xf32, #tpu.memory_space<vmem>>, vector<1x16x12xf32>
    %11 = vector.shape_cast %10 : vector<1x16x12xf32> to vector<16x12xf32>
    %cst_11 = arith.constant dense<0.000000e+00> : vector<12x128xf32>
    %12 = tpu.matmul %11, %0, %cst_11 {dimension_numbers = #tpu.dot_dimension_numbers<[0], [0], [1], [1], [0, 1, 1, 1], [], []>} : vector<16x12xf32>, vector<16x128xf32>, vector<12x128xf32> -> vector<12x128xf32>
    %13 = vector.broadcast %1 : vector<1x128xf32> to vector<12x128xf32>
    %14 = arith.addf %12, %13 : vector<12x128xf32>
    %c1_12 = arith.constant 1 : index
    %c0_13 = arith.constant 0 : index
    %c0_14 = arith.constant 0 : index
    %15 = vector.load %arg5[%c1_12, %c0_13, %c0_14] : memref<2x12x128xf32, #tpu.memory_space<vmem>>, vector<1x12x128xf32>
    %16 = vector.shape_cast %15 : vector<1x12x128xf32> to vector<12x128xf32>
    %17 = vector.shape_cast %14 : vector<12x128xf32> to vector<1x12x128xf32>
    tpu.vector_store %arg5[%c1_12, %c0_13, %c0_14], %17 {strides = array<i32>} : memref<2x12x128xf32, #tpu.memory_space<vmem>>, vector<1x12x128xf32>,
    return
  }
  func.func @transform_0(%arg0: i32, %arg1: i32) -> (i32, i32, i32) {
    %c0_i32 = arith.constant 0 : i32
    %c0_i32_0 = arith.constant 0 : i32
    return %arg0, %c0_i32, %arg1 : i32, i32, i32
  }
  func.func @transform_1(%arg0: i32, %arg1: i32) -> (i32, i32) {
    %c0_i32 = arith.constant 0 : i32
    %c0_i32_0 = arith.constant 0 : i32
    %c0_i32_1 = arith.constant 0 : i32
    return %c0_i32, %c0_i32_0 : i32, i32
  }
  func.func @transform_2(%arg0: i32, %arg1: i32) -> (i32, i32) {
    %c0_i32 = arith.constant 0 : i32
    %c0_i32_0 = arith.constant 0 : i32
    %c0_i32_1 = arith.constant 0 : i32
    return %c0_i32, %c0_i32_0 : i32, i32
  }
  func.func @transform_3(%arg0: i32, %arg1: i32) -> (i32, i32, i32) {
    %c0_i32 = arith.constant 0 : i32
    %c0_i32_0 = arith.constant 0 : i32
    return %arg0, %arg1, %c0_i32 : i32, i32, i32
  }
}

</mosaic_0001>

<llo_original>
// kernel: tpu_custom_call.1
$region0: #{tpu_custom_call.1}
  #allocation0 [shape = 'u32[]', space=smem, size = 0x4, offset = 0x4, fixed_abs, tag = 'smem constant byte address 0x4 - core index']
  #allocation1 [shape = 'u32[144,128]{1,0:T(1,128)}', space=vmem, size = 0x12000, scoped, tag = 'internal scratch']
  %s0 = inlined_call_operand.vmem [shape: f32[2,16,12], index: 0, kind: input, shape index: {}]
  %s1 = inlined_call_operand.vmem [shape: f32[16,128], index: 1, kind: input, shape index: {}]
  %s2 = inlined_call_operand.vmem [shape: f32[1,128], index: 2, kind: input, shape index: {}]
  %s3 = inlined_call_operand.vmem [shape: f32[2,12,128], index: 3, kind: output, shape index: {}]
  %s4 = sld [smem:[#allocation0]]
  $region22: #{tpu_custom_call.1} parent=0
    _
  %s6 = ssub.s32 1, %s4
  %s7 = scalar_select 0, %s6, %s4
  // Predicated region
  $region2: #{tpu_custom_call.1} parent=0 // pred_check
    _
  $region3: #{tpu_custom_call.1} parent=0 // pred_check_branch
    %9 = sbr.rel (0) target = $region5
  $region4: #{tpu_custom_call.1} parent=0 // pred_region
    _
  $region5: #{tpu_custom_call.1} parent=0 // pred_fallthru
    _
  // Predicated region
  $region6: #{tpu_custom_call.1} parent=0 // pred_check
    _
  $region7: #{tpu_custom_call.1} parent=0 // pred_check_branch
    %11 = sbr.rel (0) target = $region9
  $region8: #{tpu_custom_call.1} parent=0 // pred_region
    _
  $region9: #{tpu_custom_call.1} parent=0 // pred_fallthru
    _
  // Predicated region
  $region10: #{tpu_custom_call.1} parent=0 // pred_check
    _
  $region11: #{tpu_custom_call.1} parent=0 // pred_check_branch
    %13 = sbr.rel (0) target = $region13
  $region12: #{tpu_custom_call.1} parent=0 // pred_region
    _
  $region13: #{tpu_custom_call.1} parent=0 // pred_fallthru
    _
  %v14 = vld [vmem:[%s1] sm:$0xff]
  %v15 = vld [vmem:[%s1 + $0x8] sm:$0xff]
  %v16 = vld [vmem:[%s2] sm:$0x1]
  %v17 = vld [vmem:[%s0] sm:$0xff]
  %v18 = vld [vmem:[%s0 + $0x8] sm:$0xff]
  %v20 = vlaneseq
  %v21 = vshrl.u32 %v20, 7
  %v22 = vsub.s32 0, %v21
  %v23 = vrot.slane %v16, %v22
  %25 = vxpose.xlu0.b32.start [1/16] %v17, 128
  %26 = vxpose.xlu0.b32.cont [2/16] %v18, 128
  %27 = vxpose.xlu0.b32.cont [3/16] 0.0, 128
  %28 = vxpose.xlu0.b32.cont [4/16] 0.0, 128
  %29 = vxpose.xlu0.b32.cont [5/16] 0.0, 128
  %30 = vxpose.xlu0.b32.cont [6/16] 0.0, 128
  %31 = vxpose.xlu0.b32.cont [7/16] 0.0, 128
  %32 = vxpose.xlu0.b32.cont [8/16] 0.0, 128
  %33 = vxpose.xlu0.b32.cont [9/16] 0.0, 128
  %34 = vxpose.xlu0.b32.cont [10/16] 0.0, 128
  %35 = vxpose.xlu0.b32.cont [11/16] 0.0, 128
  %36 = vxpose.xlu0.b32.cont [12/16] 0.0, 128
  %37 = vxpose.xlu0.b32.cont [13/16] 0.0, 128
  %38 = vxpose.xlu0.b32.cont [14/16] 0.0, 128
  %39 = vxpose.xlu0.b32.cont [15/16] 0.0, 128
  %40 = vxpose.xlu0.b32.end [16/16] 0.0, 128
  %v41 = vpop.trf.xlu0
  %v42 = vpop.trf.xlu0
  %v43 = vpop.trf.xlu0
  %v44 = vpop.trf.xlu0
  %v45 = vpop.trf.xlu0
  %v46 = vpop.trf.xlu0
  %v47 = vpop.trf.xlu0
  %v48 = vpop.trf.xlu0
  %v49 = vpop.trf.xlu0
  %v50 = vpop.trf.xlu0
  %v51 = vpop.trf.xlu0
  %v52 = vpop.trf.xlu0
  %v53 = vpop.trf.xlu0
  %v54 = vpop.trf.xlu0
  %v55 = vpop.trf.xlu0
  %v56 = vpop.trf.xlu0
  %vm57 = vcmask 130048
  %v59 = vsel %vm57, %v41, 0
  %v62 = vsel %vm57, %v42, 0
  %64 = vmatprep.subr.mxu0 0.0
  %65 = vmatpush1.msra.mxu0 %v14
  %66 = vmatprep.subr.mxu0 0.0
  %67 = vmatpush1.msra.mxu0 %v15
  %68 = vmatprep.subr.mxu0 0.0
  %69 = vmatpush1.msra.mxu0 0.0
  %70 = vmatprep.subr.mxu0 0.0
  %71 = vmatpush1.msra.mxu0 0.0
  %72 = vmatprep.subr.mxu0 0.0
  %73 = vmatpush1.msra.mxu0 0.0
  %74 = vmatprep.subr.mxu0 0.0
  %75 = vmatpush1.msra.mxu0 0.0
  %76 = vmatprep.subr.mxu0 0.0
  %77 = vmatpush1.msra.mxu0 0.0
  %78 = vmatprep.subr.mxu0 0.0
  %79 = vmatpush1.msra.mxu0 0.0
  %80 = vmatprep.subr.mxu0 0.0
  %81 = vmatpush1.msra.mxu0 0.0
  %82 = vmatprep.subr.mxu0 0.0
  %83 = vmatpush1.msra.mxu0 0.0
  %84 = vmatprep.subr.mxu0 0.0
  %85 = vmatpush1.msra.mxu0 0.0
  %86 = vmatprep.subr.mxu0 0.0
  %87 = vmatpush1.msra.mxu0 0.0
  %88 = vmatprep.subr.mxu0 0.0
  %89 = vmatpush1.msra.mxu0 0.0
  %90 = vmatprep.subr.mxu0 0.0
  %91 = vmatpush1.msra.mxu0 0.0
  %92 = vmatprep.subr.mxu0 0.0
  %93 = vmatpush1.msra.mxu0 0.0
  %94 = vmatprep.subr.mxu0 0.0
  %95 = vmatpush1.msra.mxu0 0.0
  %96 = vmatprep.subr.mxu0 0.0
  %97 = vmatpush1.msra.mxu0 0.0
  %98 = vmatprep.subr.mxu0 0.0
  %99 = vmatpush1.msra.mxu0 0.0
  %100 = vmatprep.subr.mxu0 0.0
  %101 = vmatpush1.msra.mxu0 0.0
  %102 = vmatprep.subr.mxu0 0.0
  %103 = vmatpush1.msra.mxu0 0.0
  %104 = vmatprep.subr.mxu0 0.0
  %105 = vmatpush1.msra.mxu0 0.0
  %106 = vmatprep.subr.mxu0 0.0
  %107 = vmatpush1.msra.mxu0 0.0
  %108 = vmatprep.subr.mxu0 0.0
  %109 = vmatpush1.msra.mxu0 0.0
  %110 = vmatprep.subr.mxu0 0.0
  %111 = vmatpush1.msra.mxu0 0.0
  %112 = vmatprep.subr.mxu0 0.0
  %113 = vmatpush1.msra.mxu0 0.0
  %114 = vmatprep.subr.mxu0 0.0
  %115 = vmatpush1.msra.mxu0 0.0
  %116 = vmatprep.subr.mxu0 0.0
  %117 = vmatpush1.msra.mxu0 0.0
  %118 = vmatprep.subr.mxu0 0.0
  %119 = vmatpush1.msra.mxu0 0.0
  %120 = vmatprep.subr.mxu0 0.0
  %121 = vmatpush1.msra.mxu0 0.0
  %122 = vmatprep.subr.mxu0 0.0
  %123 = vmatpush1.msra.mxu0 0.0
  %124 = vmatprep.subr.mxu0 0.0
  %125 = vmatpush1.msra.mxu0 0.0
  %126 = vmatprep.subr.mxu0 0.0
  %127 = vmatpush1.msra.mxu0 0.0
  %128 = vmatprep.mubr.f32.mxu0 0.0
  %129 = vmatmul.mubr.f32.gmra.mrb[0].mxu0 %v59
  %v130 = vpop.f32.mrb[0].mxu0
  %v131 = vadd.f32 %v23, %v130
  %v132 = vpop.f32.mrb[0].mxu0
  %133 = vmatprep.mubr.f32.mxu0 0.0
  %134 = vmatmul.mubr.f32.gmra.mrb[0].mxu0 %v62
  %v135 = vpop.f32.mrb[0].mxu0
  %v136 = vadd.f32 %v23, %v135
  %v137 = vpop.f32.mrb[0].mxu0
  %138 = vdwg.mxu0
  %139 = vst [vmem:[%s3] sm:$0xff] %v131
  %140 = vst [vmem:[%s3 + $0x8] sm:$0xf] %v136
  %s141 = scalar_lea.vmem %s0, 16
  %v142 = vld [vmem:[%s141] sm:$0xff]
  %v143 = vld [vmem:[%s141 + $0x8] sm:$0xff]
  %144 = vxpose.xlu0.b32.start [1/16] %v142, 128
  %145 = vxpose.xlu0.b32.cont [2/16] %v143, 128
  %146 = vxpose.xlu0.b32.cont [3/16] 0.0, 128
  %147 = vxpose.xlu0.b32.cont [4/16] 0.0, 128
  %148 = vxpose.xlu0.b32.cont [5/16] 0.0, 128
  %149 = vxpose.xlu0.b32.cont [6/16] 0.0, 128
  %150 = vxpose.xlu0.b32.cont [7/16] 0.0, 128
  %151 = vxpose.xlu0.b32.cont [8/16] 0.0, 128
  %152 = vxpose.xlu0.b32.cont [9/16] 0.0, 128
  %153 = vxpose.xlu0.b32.cont [10/16] 0.0, 128
  %154 = vxpose.xlu0.b32.cont [11/16] 0.0, 128
  %155 = vxpose.xlu0.b32.cont [12/16] 0.0, 128
  %156 = vxpose.xlu0.b32.cont [13/16] 0.0, 128
  %157 = vxpose.xlu0.b32.cont [14/16] 0.0, 128
  %158 = vxpose.xlu0.b32.cont [15/16] 0.0, 128
  %159 = vxpose.xlu0.b32.end [16/16] 0.0, 128
  %v160 = vpop.trf.xlu0
  %v161 = vpop.trf.xlu0
  %v162 = vpop.trf.xlu0
  %v163 = vpop.trf.xlu0
  %v164 = vpop.trf.xlu0
  %v165 = vpop.trf.xlu0
  %v166 = vpop.trf.xlu0
  %v167 = vpop.trf.xlu0
  %v168 = vpop.trf.xlu0
  %v169 = vpop.trf.xlu0
  %v170 = vpop.trf.xlu0
  %v171 = vpop.trf.xlu0
  %v172 = vpop.trf.xlu0
  %v173 = vpop.trf.xlu0
  %v174 = vpop.trf.xlu0
  %v175 = vpop.trf.xlu0
  %v177 = vsel %vm57, %v160, 0
  %v180 = vsel %vm57, %v161, 0
  %182 = vmatprep.subr.mxu0 0.0
  %183 = vmatpush1.msra.mxu0 %v14
  %184 = vmatprep.subr.mxu0 0.0
  %185 = vmatpush1.msra.mxu0 %v15
  %186 = vmatprep.subr.mxu0 0.0
  %187 = vmatpush1.msra.mxu0 0.0
  %188 = vmatprep.subr.mxu0 0.0
  %189 = vmatpush1.msra.mxu0 0.0
  %190 = vmatprep.subr.mxu0 0.0
  %191 = vmatpush1.msra.mxu0 0.0
  %192 = vmatprep.subr.mxu0 0.0
  %193 = vmatpush1.msra.mxu0 0.0
  %194 = vmatprep.subr.mxu0 0.0
  %195 = vmatpush1.msra.mxu0 0.0
  %196 = vmatprep.subr.mxu0 0.0
  %197 = vmatpush1.msra.mxu0 0.0
  %198 = vmatprep.subr.mxu0 0.0
  %199 = vmatpush1.msra.mxu0 0.0
  %200 = vmatprep.subr.mxu0 0.0
  %201 = vmatpush1.msra.mxu0 0.0
  %202 = vmatprep.subr.mxu0 0.0
  %203 = vmatpush1.msra.mxu0 0.0
  %204 = vmatprep.subr.mxu0 0.0
  %205 = vmatpush1.msra.mxu0 0.0
  %206 = vmatprep.subr.mxu0 0.0
  %207 = vmatpush1.msra.mxu0 0.0
  %208 = vmatprep.subr.mxu0 0.0
  %209 = vmatpush1.msra.mxu0 0.0
  %210 = vmatprep.subr.mxu0 0.0
  %211 = vmatpush1.msra.mxu0 0.0
  %212 = vmatprep.subr.mxu0 0.0
  %213 = vmatpush1.msra.mxu0 0.0
  %214 = vmatprep.subr.mxu0 0.0
  %215 = vmatpush1.msra.mxu0 0.0
  %216 = vmatprep.subr.mxu0 0.0
  %217 = vmatpush1.msra.mxu0 0.0
  %218 = vmatprep.subr.mxu0 0.0
  %219 = vmatpush1.msra.mxu0 0.0
  %220 = vmatprep.subr.mxu0 0.0
  %221 = vmatpush1.msra.mxu0 0.0
  %222 = vmatprep.subr.mxu0 0.0
  %223 = vmatpush1.msra.mxu0 0.0
  %224 = vmatprep.subr.mxu0 0.0
  %225 = vmatpush1.msra.mxu0 0.0
  %226 = vmatprep.subr.mxu0 0.0
  %227 = vmatpush1.msra.mxu0 0.0
  %228 = vmatprep.subr.mxu0 0.0
  %229 = vmatpush1.msra.mxu0 0.0
  %230 = vmatprep.subr.mxu0 0.0
  %231 = vmatpush1.msra.mxu0 0.0
  %232 = vmatprep.subr.mxu0 0.0
  %233 = vmatpush1.msra.mxu0 0.0
  %234 = vmatprep.subr.mxu0 0.0
  %235 = vmatpush1.msra.mxu0 0.0
  %236 = vmatprep.subr.mxu0 0.0
  %237 = vmatpush1.msra.mxu0 0.0
  %238 = vmatprep.subr.mxu0 0.0
  %239 = vmatpush1.msra.mxu0 0.0
  %240 = vmatprep.subr.mxu0 0.0
  %241 = vmatpush1.msra.mxu0 0.0
  %242 = vmatprep.subr.mxu0 0.0
  %243 = vmatpush1.msra.mxu0 0.0
  %244 = vmatprep.subr.mxu0 0.0
  %245 = vmatpush1.msra.mxu0 0.0
  %246 = vmatprep.mubr.f32.mxu0 0.0
  %247 = vmatmul.mubr.f32.gmra.mrb[0].mxu0 %v177
  %v248 = vpop.f32.mrb[0].mxu0
  %v249 = vadd.f32 %v23, %v248
  %v250 = vpop.f32.mrb[0].mxu0
  %251 = vmatprep.mubr.f32.mxu0 0.0
  %252 = vmatmul.mubr.f32.gmra.mrb[0].mxu0 %v180
  %v253 = vpop.f32.mrb[0].mxu0
  %v254 = vadd.f32 %v23, %v253
  %v255 = vpop.f32.mrb[0].mxu0
  %256 = vdwg.mxu0
  %s257 = scalar_lea.vmem %s3, 16
  %258 = vst [vmem:[%s257] sm:$0xff] %v249
  %259 = vst [vmem:[%s257 + $0x8] sm:$0xf] %v254
  // Predicated region
  $region14: #{tpu_custom_call.1} parent=0 // pred_check
    _
  $region15: #{tpu_custom_call.1} parent=0 // pred_check_branch
    %261 = sbr.rel (0) target = $region17
  $region16: #{tpu_custom_call.1} parent=0 // pred_region
    _
  $region17: #{tpu_custom_call.1} parent=0 // pred_fallthru
    _
  // Predicated region
  $region18: #{tpu_custom_call.1} parent=0 // pred_check
    _
  $region19: #{tpu_custom_call.1} parent=0 // pred_check_branch
    %263 = sbr.rel (0) target = $region21
  $region20: #{tpu_custom_call.1} parent=0 // pred_region
    _
  $region21: #{tpu_custom_call.1} parent=0 // pred_fallthru
    _

</llo_original>
